<compile_context>
chip_gen: v5e
topology: v5e:2x2
jax: 0.10.0
libtpu: 0.0.40
codegen_flags: <defaults>
</compile_context>

<pallas_src>
import functools

import jax
import jax.numpy as jnp
from jax import lax
from jax.experimental import pallas as pl
from jax.experimental.pallas import tpu as pltpu


def _roll_lanes(x, shift):
    """Static circular roll along the last (lane) axis via the XLU."""
    size = x.shape[-1]
    shift = shift % size                      # pltpu.roll wants non-negative
    if shift == 0:
        return x
    return pltpu.roll(x, shift, 1)


def _dw3x3_circular(x, w, wrap_left, wrap_right, W):
    """Depthwise 3x3 conv with circular padding, channel-major flat layout.

    x: (C, H*W) f32; w: (C, 9) f32 value (tap k = 3*i + j).
    wrap_left / wrap_right: (1, H*W) bool masks for columns 0 and W-1.
    """
    # Column-shifted variants (dj = -1, 0, +1), shared across the 3 row shifts.
    # The per-row circular wrap is fixed with a second roll + select.
    x_m1 = jnp.where(wrap_left, _roll_lanes(x, 1 - W), _roll_lanes(x, 1))   # x[h, (w-1)%W]
    x_p1 = jnp.where(wrap_right, _roll_lanes(x, W - 1), _roll_lanes(x, -1)) # x[h, (w+1)%W]
    cols = (x_m1, x, x_p1)

    acc = jnp.zeros_like(x)
    for i in range(3):                  # row tap: di = i - 1
        di = i - 1
        for j in range(3):              # col tap: dj = j - 1
            base = cols[j]
            # flat roll by a multiple of W == circular shift along H
            shifted = base if di == 0 else _roll_lanes(base, -di * W)
            k = 3 * i + j
            acc = acc + shifted * w[:, k:k + 1]       # (C,1) lane-broadcast
    return acc


def _inconv_kernel(x_ref, dw1_ref, pw1_ref, dw2_ref, pw2_ref, sc_ref,
                   alpha_ref, o_ref, *, W):
    nb, _, hw = x_ref.shape
    alpha = alpha_ref[0]                             # PReLU slope (scalar, SMEM)

    # ---- step-invariants, hoisted out of the unrolled image loop ----
    col = lax.broadcasted_iota(jnp.int32, (1, hw), 1) % W
    wrap_left = col == 0
    wrap_right = col == (W - 1)
    dw1 = dw1_ref[...]                               # (Cin, 9)  f32
    dw2 = dw2_ref[...]                               # (Cout, 9) f32
    pw1 = pw1_ref[...]                               # (Cout, Cin)  bf16
    pw2 = pw2_ref[...]                               # (Cout, Cout) bf16
    sc = sc_ref[...]                                 # (Cout, Cin)  bf16

    # Short static unroll over the images in this batch block (nb is small by
    # construction) — amortizes grid-step overhead and MXU weight push/pop.
    for b in range(nb):
        x = x_ref[b].astype(jnp.float32)             # (Cin, HW), lane-dense

        # depthwise1 (circular) + residual
        res1 = _dw3x3_circular(x, dw1, wrap_left, wrap_right, W) + x
        # pointwise1: (Cout, Cin) @ (Cin, HW) on the MXU, bf16 in / f32 acc
        r1 = jnp.dot(pw1, res1.astype(jnp.bfloat16),
                     preferred_element_type=jnp.float32)
        r1 = jnp.where(r1 > 0, r1, alpha * r1)        # PReLU

        # depthwise2 (circular) + residual
        res2 = _dw3x3_circular(r1, dw2, wrap_left, wrap_right, W) + r1

        # pointwise2 + 1x1 shortcut as two accumulating dots (no concat copy;
        # on v7x the MRB accumulates the second matmul in place).
        out = jnp.dot(pw2, res2.astype(jnp.bfloat16),
                      preferred_element_type=jnp.float32)
        out = out + jnp.dot(sc, x.astype(jnp.bfloat16),
                            preferred_element_type=jnp.float32)
        o_ref[b] = out.astype(o_ref.dtype)            # unmasked lane-dense store


def inconv_forward(x_nchw, params, *, batch_block=None):
    """double_conv_dw forward. x_nchw: (N, Cin, H, W) -> (N, Cout, H, W)."""
    dw1, pw1, dw2, pw2, sc, alpha = params
    N, Cin, H, W = x_nchw.shape
    Cout = pw1.shape[0]
    HW = H * W

    if batch_block is None:
        # Default: exactly two grid steps (for N >= 2).  Big blocks amortize
        # per-step overhead and give the DMA engine usefully sized transfers,
        # while v7x's two TensorCores still get one step each ("steps of N/2
        # per core, not one giant step").  On single-TC v5e/v6e you can pass
        # batch_block=N to run a single step.
        batch_block = max(1, pl.cdiv(N, 2))
    nb = min(batch_block, N)
    n_steps = pl.cdiv(N, nb)
    n_pad = n_steps * nb

    # Kernel-friendly weight shapes / dtypes (all reshuffling done once here).
    dw1_k = dw1.reshape(Cin, 9)                      # f32 VPU taps
    dw2_k = dw2.reshape(Cout, 9)
    pw1_k = pw1.astype(jnp.bfloat16)                 # bf16 MXU operands
    pw2_k = pw2.astype(jnp.bfloat16)
    sc_k = sc.astype(jnp.bfloat16)

    x_flat = x_nchw.reshape(N, Cin, HW)              # free reshape, no transpose
    if n_pad != N:
        x_flat = jnp.pad(x_flat, ((0, n_pad - N), (0, 0), (0, 0)))

    def full2d(shape):
        return pl.BlockSpec(shape, lambda n: (0, 0))

    # NOTE: at realistic (large) H, W, add an H-tile grid axis with a 1-row
    # circular halo and set pltpu.CompilerParams(vmem_limit_bytes=...) so the
    # per-step footprint fits v7x's 64 MiB VMEM.
    out_flat = pl.pallas_call(
        functools.partial(_inconv_kernel, W=W),
        out_shape=jax.ShapeDtypeStruct((n_pad, Cout, HW), x_nchw.dtype),
        grid_spec=pltpu.PrefetchScalarGridSpec(
            num_scalar_prefetch=0,
            grid=(n_steps,),
            in_specs=[
                pl.BlockSpec((nb, Cin, HW), lambda n: (n, 0, 0)),    # x
                full2d((Cin, 9)),             # depthwise1 weight
                full2d((Cout, Cin)),          # pointwise1 weight (bf16)
                full2d((Cout, 9)),            # depthwise2 weight
                full2d((Cout, Cout)),         # pointwise2 weight (bf16)
                full2d((Cout, Cin)),          # shortcut 1x1 weight (bf16)
                pl.BlockSpec(memory_space=pltpu.MemorySpace.SMEM),   # PReLU alpha
            ],
            out_specs=pl.BlockSpec((nb, Cout, HW), lambda n: (n, 0, 0)),
        ),
        # Batch steps are independent.  For v7x, swap "parallel" for
        # pltpu.CORE_PARALLEL (or use pl.core_map over a 2-core mesh) to
        # guarantee the batch axis is sharded across both TensorCores.
        compiler_params=pltpu.CompilerParams(
            dimension_semantics=("parallel",)),
    )(x_flat, dw1_k, pw1_k, dw2_k, pw2_k, sc_k, alpha)

    if n_pad != N:
        out_flat = out_flat[:N]
    return out_flat.reshape(N, Cout, H, W)           # free reshape


def inconv_reference(x_nchw, params):
    """Pure-JAX reference of double_conv_dw forward (NCHW, PyTorch semantics)."""
    dw1, pw1, dw2, pw2, sc, alpha = params
    a = alpha[0]

    def dwconv(inp, w):                              # w: (C, 1, 3, 3), groups=C
        C = inp.shape[1]
        xp = jnp.pad(inp, ((0, 0), (0, 0), (1, 1), (1, 1)), mode='wrap')
        return lax.conv_general_dilated(
            xp, w, (1, 1), 'VALID',
            dimension_numbers=('NCHW', 'OIHW', 'NCHW'),
            feature_group_count=C)

    res1 = dwconv(x_nchw, dw1) + x_nchw
    r1 = jnp.einsum('nchw,dc->ndhw', res1, pw1)
    r1 = jnp.where(r1 > 0, r1, a * r1)
    res2 = dwconv(r1, dw2) + r1
    r2 = jnp.einsum('nchw,dc->ndhw', res2, pw2)
    return r2 + jnp.einsum('nchw,dc->ndhw', x_nchw, sc)


def make_params(key, in_ch, out_ch):
    k1, k2, k3, k4, k5 = jax.random.split(key, 5)
    dw1 = 0.1 * jax.random.normal(k1, (in_ch, 1, 3, 3), jnp.float32)    # depthwise1
    pw1 = 0.1 * jax.random.normal(k2, (out_ch, in_ch), jnp.float32)     # pointwise1
    dw2 = 0.1 * jax.random.normal(k3, (out_ch, 1, 3, 3), jnp.float32)   # depthwise2
    pw2 = 0.1 * jax.random.normal(k4, (out_ch, out_ch), jnp.float32)    # pointwise2
    sc = 0.1 * jax.random.normal(k5, (out_ch, in_ch), jnp.float32)      # shortcut 1x1
    alpha = jnp.array([0.25], jnp.float32)                              # nn.PReLU default
    return (dw1, pw1, dw2, pw2, sc, alpha)


if __name__ == "__main__":
    key = jax.random.PRNGKey(0)
    kx, kp = jax.random.split(key)

    N, Cin, Cout, H, W = 2, 4, 8, 16, 16
    x_nchw = jax.random.normal(kx, (N, Cin, H, W), jnp.float32)   # PyTorch layout
    params = make_params(kp, Cin, Cout)
    ref = inconv_reference(x_nchw, params)

    # Default policy: two grid steps (one image each at N=2).
    out = jax.block_until_ready(inconv_forward(x_nchw, params))
    assert out.shape == (N, Cout, H, W)
    err = float(jnp.max(jnp.abs(out - ref)))
    # bf16 MXU operands (f32 accumulation) -> tolerance loosened vs f32 ref.
    assert jnp.allclose(out, ref, atol=1e-2, rtol=1e-2), err

    # Batched-block path: both images in a single grid step (inner unrolled loop).
    out_b = jax.block_until_ready(inconv_forward(x_nchw, params, batch_block=2))
    err_b = float(jnp.max(jnp.abs(out_b - ref)))
    assert jnp.allclose(out_b, ref, atol=1e-2, rtol=1e-2), err_b

    print("KERNEL_OK")
</pallas_src>

<mosaic_0001>
module attributes {stable_mosaic.version = 11 : i64} {
  func.func @_inconv_kernel(%arg0: i32, %arg1: memref<1x4x256xf32, #tpu.memory_space<vmem>>, %arg2: memref<4x9xf32, #tpu.memory_space<vmem>>, %arg3: memref<8x4xbf16, #tpu.memory_space<vmem>>, %arg4: memref<8x9xf32, #tpu.memory_space<vmem>>, %arg5: memref<8x8xbf16, #tpu.memory_space<vmem>>, %arg6: memref<8x4xbf16, #tpu.memory_space<vmem>>, %arg7: memref<1xf32, #tpu.memory_space<smem>>, %arg8: memref<1x8x256xf32, #tpu.memory_space<vmem>>) attributes {dimension_semantics = [#tpu.dimension_semantics<parallel>], iteration_bounds = array<i64: 2>, scalar_prefetch = 0 : i64, scratch_operands = 0 : i64, tpu.core_type = #tpu.core_type<tc>, window_params = [{transform_indices = @transform_0, window_bounds = array<i64: 1, 4, 256>}, {pipeline_mode = #tpu.pipeline_mode<synchronous>, transform_indices = @transform_1, window_bounds = array<i64: 4, 9>}, {pipeline_mode = #tpu.pipeline_mode<synchronous>, transform_indices = @transform_2, window_bounds = array<i64: 8, 4>}, {pipeline_mode = #tpu.pipeline_mode<synchronous>, transform_indices = @transform_3, window_bounds = array<i64: 8, 9>}, {pipeline_mode = #tpu.pipeline_mode<synchronous>, transform_indices = @transform_4, window_bounds = array<i64: 8, 8>}, {pipeline_mode = #tpu.pipeline_mode<synchronous>, transform_indices = @transform_5, window_bounds = array<i64: 8, 4>}, {transform_indices = @transform_6, window_bounds = array<i64: 1>}, {transform_indices = @transform_7, window_bounds = array<i64: 1, 8, 256>}]} {
    %c0 = arith.constant 0 : index
    %0 = memref.load %arg7[%c0] : memref<1xf32, #tpu.memory_space<smem>>
    %1 = tpu.iota {dimensions = array<i32: 1>} : vector<1x256xi32>
    %c16_i32 = arith.constant 16 : i32
    %c0_i32 = arith.constant 0 : i32
    %2 = arith.cmpi eq, %c16_i32, %c0_i32 : i32
    %c1_i32 = arith.constant 1 : i32
    %3 = arith.select %2, %c1_i32, %c16_i32 : i32
    %4 = vector.broadcast %3 : i32 to vector<1x256xi32>
    %5 = arith.remsi %1, %4 : vector<1x256xi32>
    %c0_i32_0 = arith.constant 0 : i32
    %6 = vector.broadcast %c0_i32_0 : i32 to vector<1x256xi32>
    %7 = arith.cmpi ne, %5, %6 : vector<1x256xi32>
    %c0_i32_1 = arith.constant 0 : i32
    %8 = vector.broadcast %c0_i32_1 : i32 to vector<1x256xi32>
    %9 = arith.cmpi slt, %5, %8 : vector<1x256xi32>
    %c0_i32_2 = arith.constant 0 : i32
    %10 = arith.cmpi slt, %3, %c0_i32_2 : i32
    %11 = vector.broadcast %10 : i1 to vector<1x256xi1>
    %12 = vector.broadcast %11 : vector<1x256xi1> to vector<1x256xi1>
    %13 = arith.xori %9, %12 : vector<1x256xi1>
    %14 = arith.andi %13, %7 : vector<1x256xi1>
    %15 = vector.broadcast %3 : i32 to vector<1x256xi32>
    %16 = arith.addi %5, %15 : vector<1x256xi32>
    %17 = arith.select %14, %16, %5 : vector<1x256xi1>, vector<1x256xi32>
    %c0_i32_3 = arith.constant 0 : i32
    %18 = vector.broadcast %c0_i32_3 : i32 to vector<1x256xi32>
    %19 = arith.cmpi eq, %17, %18 : vector<1x256xi32>
    %c15_i32 = arith.constant 15 : i32
    %20 = vector.broadcast %c15_i32 : i32 to vector<1x256xi32>
    %21 = arith.cmpi eq, %17, %20 : vector<1x256xi32>
    %c0_4 = arith.constant 0 : index
    %c0_5 = arith.constant 0 : index
    %22 = vector.load %arg2[%c0_4, %c0_5] : memref<4x9xf32, #tpu.memory_space<vmem>>, vector<4x9xf32>
    %c0_6 = arith.constant 0 : index
    %c0_7 = arith.constant 0 : index
    %23 = vector.load %arg4[%c0_6, %c0_7] : memref<8x9xf32, #tpu.memory_space<vmem>>, vector<8x9xf32>
    %c0_8 = arith.constant 0 : index
    %c0_9 = arith.constant 0 : index
    %24 = vector.load %arg3[%c0_8, %c0_9] : memref<8x4xbf16, #tpu.memory_space<vmem>>, vector<8x4xbf16>
    %c0_10 = arith.constant 0 : index
    %c0_11 = arith.constant 0 : index
    %25 = vector.load %arg5[%c0_10, %c0_11] : memref<8x8xbf16, #tpu.memory_space<vmem>>, vector<8x8xbf16>
    %c0_12 = arith.constant 0 : index
    %c0_13 = arith.constant 0 : index
    %26 = vector.load %arg6[%c0_12, %c0_13] : memref<8x4xbf16, #tpu.memory_space<vmem>>, vector<8x4xbf16>
    %c0_14 = arith.constant 0 : index
    %c0_15 = arith.constant 0 : index
    %c0_16 = arith.constant 0 : index
    %27 = vector.load %arg1[%c0_14, %c0_15, %c0_16] : memref<1x4x256xf32, #tpu.memory_space<vmem>>, vector<1x4x256xf32>
    %28 = vector.shape_cast %27 : vector<1x4x256xf32> to vector<4x256xf32>
    %c241_i32 = arith.constant 241 : i32
    %29 = tpu.dynamic_rotate %28 by %c241_i32 dim 1 : vector<4x256xf32>, i32 -> vector<4x256xf32>
    %c1_i32_17 = arith.constant 1 : i32
    %30 = tpu.dynamic_rotate %28 by %c1_i32_17 dim 1 : vector<4x256xf32>, i32 -> vector<4x256xf32>
    %31 = vector.shape_cast %19 : vector<1x256xi1> to vector<1x256xi1>
    %32 = vector.broadcast %31 : vector<1x256xi1> to vector<4x256xi1>
    %33 = arith.select %32, %29, %30 : vector<4x256xi1>, vector<4x256xf32>
    %c15_i32_18 = arith.constant 15 : i32
    %34 = tpu.dynamic_rotate %28 by %c15_i32_18 dim 1 : vector<4x256xf32>, i32 -> vector<4x256xf32>
    %c255_i32 = arith.constant 255 : i32
    %35 = tpu.dynamic_rotate %28 by %c255_i32 dim 1 : vector<4x256xf32>, i32 -> vector<4x256xf32>
    %36 = vector.shape_cast %21 : vector<1x256xi1> to vector<1x256xi1>
    %37 = vector.broadcast %36 : vector<1x256xi1> to vector<4x256xi1>
    %38 = arith.select %37, %34, %35 : vector<4x256xi1>, vector<4x256xf32>
    %cst = arith.constant 0.000000e+00 : f32
    %39 = vector.broadcast %cst : f32 to vector<4x256xf32>
    %c16_i32_19 = arith.constant 16 : i32
    %40 = tpu.dynamic_rotate %33 by %c16_i32_19 dim 1 : vector<4x256xf32>, i32 -> vector<4x256xf32>
    %41 = vector.extract_strided_slice %22 {offsets = [0, 0], sizes = [4, 1], strides = [1, 1]} : vector<4x9xf32> to vector<4x1xf32>
    %42 = vector.broadcast %41 : vector<4x1xf32> to vector<4x256xf32>
    %43 = arith.mulf %40, %42 : vector<4x256xf32>
    %44 = arith.addf %39, %43 : vector<4x256xf32>
    %c16_i32_20 = arith.constant 16 : i32
    %45 = tpu.dynamic_rotate %28 by %c16_i32_20 dim 1 : vector<4x256xf32>, i32 -> vector<4x256xf32>
    %46 = vector.extract_strided_slice %22 {offsets = [0, 1], sizes = [4, 1], strides = [1, 1]} : vector<4x9xf32> to vector<4x1xf32>
    %47 = vector.broadcast %46 : vector<4x1xf32> to vector<4x256xf32>
    %48 = arith.mulf %45, %47 : vector<4x256xf32>
    %49 = arith.addf %44, %48 : vector<4x256xf32>
    %c16_i32_21 = arith.constant 16 : i32
    %50 = tpu.dynamic_rotate %38 by %c16_i32_21 dim 1 : vector<4x256xf32>, i32 -> vector<4x256xf32>
    %51 = vector.extract_strided_slice %22 {offsets = [0, 2], sizes = [4, 1], strides = [1, 1]} : vector<4x9xf32> to vector<4x1xf32>
    %52 = vector.broadcast %51 : vector<4x1xf32> to vector<4x256xf32>
    %53 = arith.mulf %50, %52 : vector<4x256xf32>
    %54 = arith.addf %49, %53 : vector<4x256xf32>
    %55 = vector.extract_strided_slice %22 {offsets = [0, 3], sizes = [4, 1], strides = [1, 1]} : vector<4x9xf32> to vector<4x1xf32>
    %56 = vector.broadcast %55 : vector<4x1xf32> to vector<4x256xf32>
    %57 = arith.mulf %33, %56 : vector<4x256xf32>
    %58 = arith.addf %54, %57 : vector<4x256xf32>
    %59 = vector.extract_strided_slice %22 {offsets = [0, 4], sizes = [4, 1], strides = [1, 1]} : vector<4x9xf32> to vector<4x1xf32>
    %60 = vector.broadcast %59 : vector<4x1xf32> to vector<4x256xf32>
    %61 = arith.mulf %28, %60 : vector<4x256xf32>
    %62 = arith.addf %58, %61 : vector<4x256xf32>
    %63 = vector.extract_strided_slice %22 {offsets = [0, 5], sizes = [4, 1], strides = [1, 1]} : vector<4x9xf32> to vector<4x1xf32>
    %64 = vector.broadcast %63 : vector<4x1xf32> to vector<4x256xf32>
    %65 = arith.mulf %38, %64 : vector<4x256xf32>
    %66 = arith.addf %62, %65 : vector<4x256xf32>
    %c240_i32 = arith.constant 240 : i32
    %67 = tpu.dynamic_rotate %33 by %c240_i32 dim 1 : vector<4x256xf32>, i32 -> vector<4x256xf32>
    %68 = vector.extract_strided_slice %22 {offsets = [0, 6], sizes = [4, 1], strides = [1, 1]} : vector<4x9xf32> to vector<4x1xf32>
    %69 = vector.broadcast %68 : vector<4x1xf32> to vector<4x256xf32>
    %70 = arith.mulf %67, %69 : vector<4x256xf32>
    %71 = arith.addf %66, %70 : vector<4x256xf32>
    %c240_i32_22 = arith.constant 240 : i32
    %72 = tpu.dynamic_rotate %28 by %c240_i32_22 dim 1 : vector<4x256xf32>, i32 -> vector<4x256xf32>
    %73 = vector.extract_strided_slice %22 {offsets = [0, 7], sizes = [4, 1], strides = [1, 1]} : vector<4x9xf32> to vector<4x1xf32>
    %74 = vector.broadcast %73 : vector<4x1xf32> to vector<4x256xf32>
    %75 = arith.mulf %72, %74 : vector<4x256xf32>
    %76 = arith.addf %71, %75 : vector<4x256xf32>
    %c240_i32_23 = arith.constant 240 : i32
    %77 = tpu.dynamic_rotate %38 by %c240_i32_23 dim 1 : vector<4x256xf32>, i32 -> vector<4x256xf32>
    %78 = vector.extract_strided_slice %22 {offsets = [0, 8], sizes = [4, 1], strides = [1, 1]} : vector<4x9xf32> to vector<4x1xf32>
    %79 = vector.broadcast %78 : vector<4x1xf32> to vector<4x256xf32>
    %80 = arith.mulf %77, %79 : vector<4x256xf32>
    %81 = arith.addf %76, %80 : vector<4x256xf32>
    %82 = arith.addf %81, %28 : vector<4x256xf32>
    %83 = arith.truncf %82 : vector<4x256xf32> to vector<4x256xbf16>
    %cst_24 = arith.constant dense<0.000000e+00> : vector<8x256xf32>
    %84 = tpu.matmul %24, %83, %cst_24 {dimension_numbers = #tpu.dot_dimension_numbers<[1], [0], [0], [1], [0, 0, 1, 1], [], []>} : vector<8x4xbf16>, vector<4x256xbf16>, vector<8x256xf32> -> vector<8x256xf32>
    %cst_25 = arith.constant 0.000000e+00 : f32
    %85 = vector.broadcast %cst_25 : f32 to vector<8x256xf32>
    %86 = arith.cmpf ogt, %84, %85 : vector<8x256xf32>
    %87 = vector.broadcast %0 : f32 to vector<8x256xf32>
    %88 = arith.mulf %87, %84 : vector<8x256xf32>
    %89 = arith.select %86, %84, %88 : vector<8x256xi1>, vector<8x256xf32>
    %c241_i32_26 = arith.constant 241 : i32
    %90 = tpu.dynamic_rotate %89 by %c241_i32_26 dim 1 : vector<8x256xf32>, i32 -> vector<8x256xf32>
    %c1_i32_27 = arith.constant 1 : i32
    %91 = tpu.dynamic_rotate %89 by %c1_i32_27 dim 1 : vector<8x256xf32>, i32 -> vector<8x256xf32>
    %92 = vector.shape_cast %19 : vector<1x256xi1> to vector<1x256xi1>
    %93 = vector.broadcast %92 : vector<1x256xi1> to vector<8x256xi1>
    %94 = arith.select %93, %90, %91 : vector<8x256xi1>, vector<8x256xf32>
    %c15_i32_28 = arith.constant 15 : i32
    %95 = tpu.dynamic_rotate %89 by %c15_i32_28 dim 1 : vector<8x256xf32>, i32 -> vector<8x256xf32>
    %c255_i32_29 = arith.constant 255 : i32
    %96 = tpu.dynamic_rotate %89 by %c255_i32_29 dim 1 : vector<8x256xf32>, i32 -> vector<8x256xf32>
    %97 = vector.shape_cast %21 : vector<1x256xi1> to vector<1x256xi1>
    %98 = vector.broadcast %97 : vector<1x256xi1> to vector<8x256xi1>
    %99 = arith.select %98, %95, %96 : vector<8x256xi1>, vector<8x256xf32>
    %cst_30 = arith.constant 0.000000e+00 : f32
    %100 = vector.broadcast %cst_30 : f32 to vector<8x256xf32>
    %c16_i32_31 = arith.constant 16 : i32
    %101 = tpu.dynamic_rotate %94 by %c16_i32_31 dim 1 : vector<8x256xf32>, i32 -> vector<8x256xf32>
    %102 = vector.extract_strided_slice %23 {offsets = [0, 0], sizes = [8, 1], strides = [1, 1]} : vector<8x9xf32> to vector<8x1xf32>
    %103 = vector.broadcast %102 : vector<8x1xf32> to vector<8x256xf32>
    %104 = arith.mulf %101, %103 : vector<8x256xf32>
    %105 = arith.addf %100, %104 : vector<8x256xf32>
    %c16_i32_32 = arith.constant 16 : i32
    %106 = tpu.dynamic_rotate %89 by %c16_i32_32 dim 1 : vector<8x256xf32>, i32 -> vector<8x256xf32>
    %107 = vector.extract_strided_slice %23 {offsets = [0, 1], sizes = [8, 1], strides = [1, 1]} : vector<8x9xf32> to vector<8x1xf32>
    %108 = vector.broadcast %107 : vector<8x1xf32> to vector<8x256xf32>
    %109 = arith.mulf %106, %108 : vector<8x256xf32>
    %110 = arith.addf %105, %109 : vector<8x256xf32>
    %c16_i32_33 = arith.constant 16 : i32
    %111 = tpu.dynamic_rotate %99 by %c16_i32_33 dim 1 : vector<8x256xf32>, i32 -> vector<8x256xf32>
    %112 = vector.extract_strided_slice %23 {offsets = [0, 2], sizes = [8, 1], strides = [1, 1]} : vector<8x9xf32> to vector<8x1xf32>
    %113 = vector.broadcast %112 : vector<8x1xf32> to vector<8x256xf32>
    %114 = arith.mulf %111, %113 : vector<8x256xf32>
    %115 = arith.addf %110, %114 : vector<8x256xf32>
    %116 = vector.extract_strided_slice %23 {offsets = [0, 3], sizes = [8, 1], strides = [1, 1]} : vector<8x9xf32> to vector<8x1xf32>
    %117 = vector.broadcast %116 : vector<8x1xf32> to vector<8x256xf32>
    %118 = arith.mulf %94, %117 : vector<8x256xf32>
    %119 = arith.addf %115, %118 : vector<8x256xf32>
    %120 = vector.extract_strided_slice %23 {offsets = [0, 4], sizes = [8, 1], strides = [1, 1]} : vector<8x9xf32> to vector<8x1xf32>
    %121 = vector.broadcast %120 : vector<8x1xf32> to vector<8x256xf32>
    %122 = arith.mulf %89, %121 : vector<8x256xf32>
    %123 = arith.addf %119, %122 : vector<8x256xf32>
    %124 = vector.extract_strided_slice %23 {offsets = [0, 5], sizes = [8, 1], strides = [1, 1]} : vector<8x9xf32> to vector<8x1xf32>
    %125 = vector.broadcast %124 : vector<8x1xf32> to vector<8x256xf32>
    %126 = arith.mulf %99, %125 : vector<8x256xf32>
    %127 = arith.addf %123, %126 : vector<8x256xf32>
    %c240_i32_34 = arith.constant 240 : i32
    %128 = tpu.dynamic_rotate %94 by %c240_i32_34 dim 1 : vector<8x256xf32>, i32 -> vector<8x256xf32>
    %129 = vector.extract_strided_slice %23 {offsets = [0, 6], sizes = [8, 1], strides = [1, 1]} : vector<8x9xf32> to vector<8x1xf32>
    %130 = vector.broadcast %129 : vector<8x1xf32> to vector<8x256xf32>
    %131 = arith.mulf %128, %130 : vector<8x256xf32>
    %132 = arith.addf %127, %131 : vector<8x256xf32>
    %c240_i32_35 = arith.constant 240 : i32
    %133 = tpu.dynamic_rotate %89 by %c240_i32_35 dim 1 : vector<8x256xf32>, i32 -> vector<8x256xf32>
    %134 = vector.extract_strided_slice %23 {offsets = [0, 7], sizes = [8, 1], strides = [1, 1]} : vector<8x9xf32> to vector<8x1xf32>
    %135 = vector.broadcast %134 : vector<8x1xf32> to vector<8x256xf32>
    %136 = arith.mulf %133, %135 : vector<8x256xf32>
    %137 = arith.addf %132, %136 : vector<8x256xf32>
    %c240_i32_36 = arith.constant 240 : i32
    %138 = tpu.dynamic_rotate %99 by %c240_i32_36 dim 1 : vector<8x256xf32>, i32 -> vector<8x256xf32>
    %139 = vector.extract_strided_slice %23 {offsets = [0, 8], sizes = [8, 1], strides = [1, 1]} : vector<8x9xf32> to vector<8x1xf32>
    %140 = vector.broadcast %139 : vector<8x1xf32> to vector<8x256xf32>
    %141 = arith.mulf %138, %140 : vector<8x256xf32>
    %142 = arith.addf %137, %141 : vector<8x256xf32>
    %143 = arith.addf %142, %89 : vector<8x256xf32>
    %144 = arith.truncf %143 : vector<8x256xf32> to vector<8x256xbf16>
    %cst_37 = arith.constant dense<0.000000e+00> : vector<8x256xf32>
    %145 = tpu.matmul %25, %144, %cst_37 {dimension_numbers = #tpu.dot_dimension_numbers<[1], [0], [0], [1], [0, 0, 1, 1], [], []>} : vector<8x8xbf16>, vector<8x256xbf16>, vector<8x256xf32> -> vector<8x256xf32>
    %146 = arith.truncf %28 : vector<4x256xf32> to vector<4x256xbf16>
    %cst_38 = arith.constant dense<0.000000e+00> : vector<8x256xf32>
    %147 = tpu.matmul %26, %146, %cst_38 {dimension_numbers = #tpu.dot_dimension_numbers<[1], [0], [0], [1], [0, 0, 1, 1], [], []>} : vector<8x4xbf16>, vector<4x256xbf16>, vector<8x256xf32> -> vector<8x256xf32>
    %148 = arith.addf %145, %147 : vector<8x256xf32>
    %c0_39 = arith.constant 0 : index
    %c0_40 = arith.constant 0 : index
    %c0_41 = arith.constant 0 : index
    %149 = vector.load %arg8[%c0_39, %c0_40, %c0_41] : memref<1x8x256xf32, #tpu.memory_space<vmem>>, vector<1x8x256xf32>
    %150 = vector.shape_cast %149 : vector<1x8x256xf32> to vector<8x256xf32>
    %151 = vector.shape_cast %148 : vector<8x256xf32> to vector<1x8x256xf32>
    tpu.vector_store %arg8[%c0_39, %c0_40, %c0_41], %151 {strides = array<i32>} : memref<1x8x256xf32, #tpu.memory_space<vmem>>, vector<1x8x256xf32>,
    return
  }
  func.func @transform_0(%arg0: i32) -> (i32, i32, i32) {
    %c0_i32 = arith.constant 0 : i32
    %c0_i32_0 = arith.constant 0 : i32
    %c0_i32_1 = arith.constant 0 : i32
    return %arg0, %c0_i32, %c0_i32_0 : i32, i32, i32
  }
  func.func @transform_1(%arg0: i32) -> (i32, i32) {
    %c0_i32 = arith.constant 0 : i32
    %c0_i32_0 = arith.constant 0 : i32
    %c0_i32_1 = arith.constant 0 : i32
    return %c0_i32, %c0_i32_0 : i32, i32
  }
  func.func @transform_2(%arg0: i32) -> (i32, i32) {
    %c0_i32 = arith.constant 0 : i32
    %c0_i32_0 = arith.constant 0 : i32
    %c0_i32_1 = arith.constant 0 : i32
    return %c0_i32, %c0_i32_0 : i32, i32
  }
  func.func @transform_3(%arg0: i32) -> (i32, i32) {
    %c0_i32 = arith.constant 0 : i32
    %c0_i32_0 = arith.constant 0 : i32
    %c0_i32_1 = arith.constant 0 : i32
    return %c0_i32, %c0_i32_0 : i32, i32
  }
  func.func @transform_4(%arg0: i32) -> (i32, i32) {
    %c0_i32 = arith.constant 0 : i32
    %c0_i32_0 = arith.constant 0 : i32
    %c0_i32_1 = arith.constant 0 : i32
    return %c0_i32, %c0_i32_0 : i32, i32
  }
  func.func @transform_5(%arg0: i32) -> (i32, i32) {
    %c0_i32 = arith.constant 0 : i32
    %c0_i32_0 = arith.constant 0 : i32
    %c0_i32_1 = arith.constant 0 : i32
    return %c0_i32, %c0_i32_0 : i32, i32
  }
  func.func @transform_6(%arg0: i32) -> i32 {
    %c0_i32 = arith.constant 0 : i32
    %c0_i32_0 = arith.constant 0 : i32
    return %c0_i32 : i32
  }
  func.func @transform_7(%arg0: i32) -> (i32, i32, i32) {
    %c0_i32 = arith.constant 0 : i32
    %c0_i32_0 = arith.constant 0 : i32
    %c0_i32_1 = arith.constant 0 : i32
    return %arg0, %c0_i32, %c0_i32_0 : i32, i32, i32
  }
}

</mosaic_0001>

<llo_original>
// kernel: tpu_custom_call.1
$region0: #{tpu_custom_call.1}
  #allocation0 [shape = 'u32[]', space=smem, size = 0x4, offset = 0x4, fixed_abs, tag = 'smem constant byte address 0x4 - core index']
  #allocation1 [shape = 'u32[72,128]{1,0:T(1,128)}', space=vmem, size = 0x9000, scoped, tag = 'internal scratch']
  #allocation2 [shape = 'f32[1]{0:T(128)S(6)}', space=smem, size = 0x200, scoped, tag = 'scoped memory for tpu_custom_call.1']
  %s0 = inlined_call_operand.hbm [shape: f32[2,4,256], index: 0, kind: input, shape index: {}]
  %s1 = inlined_call_operand.hbm [shape: f32[4,9], index: 1, kind: input, shape index: {}]
  %s2 = inlined_call_operand.vmem [shape: bf16[8,4], index: 2, kind: input, shape index: {}]
  %s3 = inlined_call_operand.vmem [shape: f32[8,9], index: 3, kind: input, shape index: {}]
  %s4 = inlined_call_operand.hbm [shape: bf16[8,8], index: 4, kind: input, shape index: {}]
  %s5 = inlined_call_operand.vmem [shape: bf16[8,4], index: 5, kind: input, shape index: {}]
  %s6 = inlined_call_operand.<no memory space> [shape: f32[1], index: 6, kind: input, shape index: {}]
  %s7 = inlined_call_operand.hbm [shape: f32[2,8,256], index: 7, kind: output, shape index: {}]
  %s8 = sld [smem:[#allocation0]]
  $region73: #{tpu_custom_call.1} parent=0
    _
  %s10 = ssub.s32 1, %s8
  %s11 = scalar_select 0, %s10, %s8
  %12 = sst [smem:[#allocation2]] %s6
  $region1: #{tpu_custom_call.1} parent=0
    #allocation3 [shape = 'u8[8192]{0}', space=vmem, size = 0x2000, scoped, tag = 'input window, operand 0']
    #allocation4 [shape = 's32[2]{0}', space=sflag, size = 0x8, scoped, tag = 'scoped memory for tpu_custom_call.1']
    #allocation5 [shape = 's32[2]{0}', space=sflag, size = 0x8, scoped, tag = 'scoped memory for tpu_custom_call.1']
    #allocation6 [shape = 'u8[2048]{0}', space=vmem, size = 0x800, scoped, tag = 'input window, operand 1, single buffered']
    #allocation7 [shape = 's32[1]{0}', space=sflag, size = 0x4, scoped, tag = 'scoped memory for tpu_custom_call.1']
    #allocation8 [shape = 'u8[2048]{0}', space=vmem, size = 0x800, scoped, tag = 'input window, operand 4, single buffered']
    #allocation9 [shape = 'u8[16384]{0}', space=vmem, size = 0x4000, scoped, tag = 'output window, operand 0']
    %13 = vsyncpa [#allocation4], 0
    %s14 = scalar_lea.sflag [#allocation4], 1
    %15 = vsyncpa %s14, 0
    %16 = vsyncpa [#allocation7], 0
    %17 = vsyncpa [#allocation5], 0
    %s18 = scalar_lea.sflag [#allocation5], 1
    %19 = vsyncpa %s18, 0
    loop: start=0, step=1, limit=4
    $region2: #{tpu_custom_call.1} parent=1 // loop_pre_header
      _
    $region3: #{tpu_custom_call.1} parent=1 // loop_header
      %s21 = sphi 0, %s25
      %p22 = scmp.ge.s32.totalorder %s21, 4
      %s31 = sphi 0, %s33
      %s34 = sphi 0, %s31
      %s35 = sphi 0, %s34
      %s51 = sphi 0, %s35
      %s55 = sphi 0, %s55
      %s57 = sphi 0, %s55
      %s58 = sphi 0, %s57
      %s72 = sphi 0, %s58
      %s76 = sphi 0, %s76
      %s78 = sphi 0, %s76
      %s79 = sphi 0, %s78
      %s93 = sphi 0, %s79
      %s97 = sphi 0, %s97
      %s99 = sphi 0, %s97
      %s100 = sphi 0, %s99
      %s114 = sphi 0, %s100
      %s118 = sphi 0, %s118
      %s120 = sphi 0, %s118
      %s121 = sphi 0, %s120
      %s135 = sphi 0, %s121
      %s139 = sphi 0, %s139
      %s141 = sphi 0, %s139
      %s142 = sphi 0, %s141
      %s156 = sphi 0, %s142
      %s160 = sphi 0, %s160
      %s162 = sphi 0, %s160
      %s163 = sphi 0, %s162
      %s177 = sphi 0, %s163
      %s183 = sphi 0, %s185
      %s186 = sphi 0, %s183
      %s187 = sphi 0, %s186
      %s203 = sphi 0, %s187
    $region4: #{tpu_custom_call.1} parent=1 // loop_header_branch
      %24 = sbr.rel (%p22) target = $region8
    $region5: #{tpu_custom_call.1} parent=1 // loop_body
      %s26 = ssub.s32 %s21, 1
      %s27 = ssub.s32 %s21, 2
      %s28 = sadd.s32 %s21, 1
      %s29 = ssub.s32 %s21, %s28
      %p30 = scmp.eq.s32.totalorder %s29, 0
      %s32 = sadd.s32 %s31, 1
      %s33 = scalar_select %p30, %s31, %s32
      %p36 = pneg %p30
      %p37 = scmp.eq.s32.totalorder %s21, 1
      %p38 = por %p36, %p37
      %p39 = scmp.ne.s32.totalorder %s31, %s34
      %p40 = scmp.eq.s32.totalorder %s21, 0
      %p41 = por %p39, %p40
      %p42 = scmp.ne.s32.totalorder %s31, %s34
      %p43 = scmp.eq.s32.totalorder %s26, 1
      %p44 = por %p42, %p43
      %p45 = scmp.ne.s32.totalorder %s34, %s35
      %p46 = scmp.eq.s32.totalorder %s26, 0
      %p47 = por %p45, %p46
      %p48 = scmp.ne.s32.totalorder %s34, %s35
      %p49 = scmp.eq.s32.totalorder %s27, 1
      %p50 = por %p48, %p49
      %p52 = scmp.ne.s32.totalorder %s35, %s51
      %p53 = scmp.eq.s32.totalorder %s27, 0
      %p54 = por %p52, %p53
      %s56 = sadd.s32 %s55, 1
      %p59 = scmp.eq.s32.totalorder %s21, 1
      %p60 = scmp.ne.s32.totalorder %s55, %s57
      %p61 = scmp.eq.s32.totalorder %s21, 0
      %p62 = por %p60, %p61
      %p63 = scmp.ne.s32.totalorder %s55, %s57
      %p64 = scmp.eq.s32.totalorder %s26, 1
      %p65 = por %p63, %p64
      %p66 = scmp.ne.s32.totalorder %s57, %s58
      %p67 = scmp.eq.s32.totalorder %s26, 0
      %p68 = por %p66, %p67
      %p69 = scmp.ne.s32.totalorder %s57, %s58
      %p70 = scmp.eq.s32.totalorder %s27, 1
      %p71 = por %p69, %p70
      %p73 = scmp.ne.s32.totalorder %s58, %s72
      %p74 = scmp.eq.s32.totalorder %s27, 0
      %p75 = por %p73, %p74
      %s77 = sadd.s32 %s76, 1
      %p80 = scmp.eq.s32.totalorder %s21, 1
      %p81 = scmp.ne.s32.totalorder %s76, %s78
      %p82 = scmp.eq.s32.totalorder %s21, 0
      %p83 = por %p81, %p82
      %p84 = scmp.ne.s32.totalorder %s76, %s78
      %p85 = scmp.eq.s32.totalorder %s26, 1
      %p86 = por %p84, %p85
      %p87 = scmp.ne.s32.totalorder %s78, %s79
      %p88 = scmp.eq.s32.totalorder %s26, 0
      %p89 = por %p87, %p88
      %p90 = scmp.ne.s32.totalorder %s78, %s79
      %p91 = scmp.eq.s32.totalorder %s27, 1
      %p92 = por %p90, %p91
      %p94 = scmp.ne.s32.totalorder %s79, %s93
      %p95 = scmp.eq.s32.totalorder %s27, 0
      %p96 = por %p94, %p95
      %s98 = sadd.s32 %s97, 1
      %p101 = scmp.eq.s32.totalorder %s21, 1
      %p102 = scmp.ne.s32.totalorder %s97, %s99
      %p103 = scmp.eq.s32.totalorder %s21, 0
      %p104 = por %p102, %p103
      %p105 = scmp.ne.s32.totalorder %s97, %s99
      %p106 = scmp.eq.s32.totalorder %s26, 1
      %p107 = por %p105, %p106
      %p108 = scmp.ne.s32.totalorder %s99, %s100
      %p109 = scmp.eq.s32.totalorder %s26, 0
      %p110 = por %p108, %p109
      %p111 = scmp.ne.s32.totalorder %s99, %s100
      %p112 = scmp.eq.s32.totalorder %s27, 1
      %p113 = por %p111, %p112
      %p115 = scmp.ne.s32.totalorder %s100, %s114
      %p116 = scmp.eq.s32.totalorder %s27, 0
      %p117 = por %p115, %p116
      %s119 = sadd.s32 %s118, 1
      %p122 = scmp.eq.s32.totalorder %s21, 1
      %p123 = scmp.ne.s32.totalorder %s118, %s120
      %p124 = scmp.eq.s32.totalorder %s21, 0
      %p125 = por %p123, %p124
      %p126 = scmp.ne.s32.totalorder %s118, %s120
      %p127 = scmp.eq.s32.totalorder %s26, 1
      %p128 = por %p126, %p127
      %p129 = scmp.ne.s32.totalorder %s120, %s121
      %p130 = scmp.eq.s32.totalorder %s26, 0
      %p131 = por %p129, %p130
      %p132 = scmp.ne.s32.totalorder %s120, %s121
      %p133 = scmp.eq.s32.totalorder %s27, 1
      %p134 = por %p132, %p133
      %p136 = scmp.ne.s32.totalorder %s121, %s135
      %p137 = scmp.eq.s32.totalorder %s27, 0
      %p138 = por %p136, %p137
      %s140 = sadd.s32 %s139, 1
      %p143 = scmp.eq.s32.totalorder %s21, 1
      %p144 = scmp.ne.s32.totalorder %s139, %s141
      %p145 = scmp.eq.s32.totalorder %s21, 0
      %p146 = por %p144, %p145
      %p147 = scmp.ne.s32.totalorder %s139, %s141
      %p148 = scmp.eq.s32.totalorder %s26, 1
      %p149 = por %p147, %p148
      %p150 = scmp.ne.s32.totalorder %s141, %s142
      %p151 = scmp.eq.s32.totalorder %s26, 0
      %p152 = por %p150, %p151
      %p153 = scmp.ne.s32.totalorder %s141, %s142
      %p154 = scmp.eq.s32.totalorder %s27, 1
      %p155 = por %p153, %p154
      %p157 = scmp.ne.s32.totalorder %s142, %s156
      %p158 = scmp.eq.s32.totalorder %s27, 0
      %p159 = por %p157, %p158
      %s161 = sadd.s32 %s160, 1
      %p164 = scmp.eq.s32.totalorder %s21, 1
      %p165 = scmp.ne.s32.totalorder %s160, %s162
      %p166 = scmp.eq.s32.totalorder %s21, 0
      %p167 = por %p165, %p166
      %p168 = scmp.ne.s32.totalorder %s160, %s162
      %p169 = scmp.eq.s32.totalorder %s26, 1
      %p170 = por %p168, %p169
      %p171 = scmp.ne.s32.totalorder %s162, %s163
      %p172 = scmp.eq.s32.totalorder %s26, 0
      %p173 = por %p171, %p172
      %p174 = scmp.ne.s32.totalorder %s162, %s163
      %p175 = scmp.eq.s32.totalorder %s27, 1
      %p176 = por %p174, %p175
      %p178 = scmp.ne.s32.totalorder %s163, %s177
      %p179 = scmp.eq.s32.totalorder %s27, 0
      %p180 = por %p178, %p179
      %s181 = ssub.s32 %s21, %s28
      %p182 = scmp.eq.s32.totalorder %s181, 0
      %s184 = sadd.s32 %s183, 1
      %s185 = scalar_select %p182, %s183, %s184
      %p188 = pneg %p182
      %p189 = scmp.eq.s32.totalorder %s21, 1
      %p190 = por %p188, %p189
      %p191 = scmp.ne.s32.totalorder %s183, %s186
      %p192 = scmp.eq.s32.totalorder %s21, 0
      %p193 = por %p191, %p192
      %p194 = scmp.ne.s32.totalorder %s183, %s186
      %p195 = scmp.eq.s32.totalorder %s26, 1
      %p196 = por %p194, %p195
      %p197 = scmp.ne.s32.totalorder %s186, %s187
      %p198 = scmp.eq.s32.totalorder %s26, 0
      %p199 = por %p197, %p198
      %p200 = scmp.ne.s32.totalorder %s186, %s187
      %p201 = scmp.eq.s32.totalorder %s27, 1
      %p202 = por %p200, %p201
      %p204 = scmp.ne.s32.totalorder %s187, %s203
      %p205 = scmp.eq.s32.totalorder %s27, 0
      %p206 = por %p204, %p205
      %p207 = scmp.le.s32.totalorder 1, %s21
      %p208 = scmp.lt.s32.totalorder %s21, 3
      %p209 = pnand %p207, %p208
      %p210 = pneg %p209
      // Predicated region
      $region9: #{tpu_custom_call.1} parent=5 // pred_check
        _
      $region10: #{tpu_custom_call.1} parent=5 // pred_check_branch
        %212 = sbr.rel (%p209) target = $region12
      $region11: #{tpu_custom_call.1} parent=5 // pred_region
        %s213 = ssub.s32 %s21, 1
        // Predicated region
        $region13: #{tpu_custom_call.1} parent=11 // pred_check
          %p214 = pneg %p68
        $region14: #{tpu_custom_call.1} parent=11 // pred_check_branch
          %216 = sbr.rel (%p214) target = $region16
        $region15: #{tpu_custom_call.1} parent=11 // pred_region
          %218 = vsyncadd [#allocation7], 0
          %s220 = sshll.u32 %s1, 4
          %s221 = int_to_ptr.hbm [resolvable:$true] %s220
          %s222 = sshll.u32 [#allocation6], 4
          %s223 = int_to_ptr.vmem [resolvable:$true] %s222
          %225 = dma.hbm_to_vmem [thread:$0]  %s221, 64, %s223, [#allocation7]
        $region16: #{tpu_custom_call.1} parent=11 // pred_fallthru
          _
        // Predicated region
        $region17: #{tpu_custom_call.1} parent=11 // pred_check
          %p226 = pneg %p89
        $region18: #{tpu_custom_call.1} parent=11 // pred_check_branch
          %228 = sbr.rel (%p226) target = $region20
        $region19: #{tpu_custom_call.1} parent=11 // pred_region
          _
        $region20: #{tpu_custom_call.1} parent=11 // pred_fallthru
          _
        // Predicated region
        $region21: #{tpu_custom_call.1} parent=11 // pred_check
          %p229 = pneg %p110
        $region22: #{tpu_custom_call.1} parent=11 // pred_check_branch
          %231 = sbr.rel (%p229) target = $region24
        $region23: #{tpu_custom_call.1} parent=11 // pred_region
          _
        $region24: #{tpu_custom_call.1} parent=11 // pred_fallthru
          _
        // Predicated region
        $region25: #{tpu_custom_call.1} parent=11 // pred_check
          %p232 = pneg %p131
        $region26: #{tpu_custom_call.1} parent=11 // pred_check_branch
          %234 = sbr.rel (%p232) target = $region28
        $region27: #{tpu_custom_call.1} parent=11 // pred_region
          %236 = vsyncadd [#allocation7], 0
          %s238 = sshll.u32 %s4, 4
          %s239 = int_to_ptr.hbm [resolvable:$true] %s238
          %s240 = sshll.u32 [#allocation8], 4
          %s241 = int_to_ptr.vmem [resolvable:$true] %s240
          %243 = dma.hbm_to_vmem [thread:$0]  %s239, 64, %s241, [#allocation7]
        $region28: #{tpu_custom_call.1} parent=11 // pred_fallthru
          _
        // Predicated region
        $region29: #{tpu_custom_call.1} parent=11 // pred_check
          %p244 = pneg %p152
        $region30: #{tpu_custom_call.1} parent=11 // pred_check_branch
          %246 = sbr.rel (%p244) target = $region32
        $region31: #{tpu_custom_call.1} parent=11 // pred_region
          _
        $region32: #{tpu_custom_call.1} parent=11 // pred_fallthru
          _
        // Predicated region
        $region33: #{tpu_custom_call.1} parent=11 // pred_check
          %p247 = pneg %p173
        $region34: #{tpu_custom_call.1} parent=11 // pred_check_branch
          %249 = sbr.rel (%p247) target = $region36
        $region35: #{tpu_custom_call.1} parent=11 // pred_region
          _
        $region36: #{tpu_custom_call.1} parent=11 // pred_fallthru
          _
      $region12: #{tpu_custom_call.1} parent=5 // pred_fallthru
        _
      %p250 = scmp.lt.s32.totalorder %s21, 2
      // Predicated region
      $region37: #{tpu_custom_call.1} parent=5 // pred_check
        %p251 = pneg %p250
      $region38: #{tpu_custom_call.1} parent=5 // pred_check_branch
        %253 = sbr.rel (%p251) target = $region40
      $region39: #{tpu_custom_call.1} parent=5 // pred_region
        // Predicated region
        $region41: #{tpu_custom_call.1} parent=39 // pred_check
          %p254 = pneg %p41
        $region42: #{tpu_custom_call.1} parent=39 // pred_check_branch
          %256 = sbr.rel (%p254) target = $region44
        $region43: #{tpu_custom_call.1} parent=39 // pred_region
          %s257 = sand.u32 %s31, 1
          %s258 = scalar_lea.sflag [#allocation4], %s257
          %s259 = sand.u32 %s31, 1
          %s260 = smul.addr %s259, 8
          %s261 = scalar_lea.vmem [#allocation3], %s260
          %263 = vsyncadd %s258, 0
          %s264 = smul.addr %s21, 2
          %s265 = smul.addr %s264, 4
          %s266 = scalar_lea.hbm %s0, %s265
          %s268 = sshll.u32 %s266, 4
          %s269 = int_to_ptr.hbm [resolvable:$true] %s268
          %s270 = sshll.u32 %s261, 4
          %s271 = int_to_ptr.vmem [resolvable:$true] %s270
          %273 = dma.hbm_to_vmem [thread:$0]  %s269, 128, %s271, %s258
        $region44: #{tpu_custom_call.1} parent=39 // pred_fallthru
          _
      $region40: #{tpu_custom_call.1} parent=5 // pred_fallthru
        _
      %p274 = scmp.le.s32.totalorder 1, %s21
      %p275 = scmp.lt.s32.totalorder %s21, 3
      %p276 = pnand %p274, %p275
      %p277 = pneg %p276
      // Predicated region
      $region45: #{tpu_custom_call.1} parent=5 // pred_check
        _
      $region46: #{tpu_custom_call.1} parent=5 // pred_check_branch
        %279 = sbr.rel (%p276) target = $region48
      $region47: #{tpu_custom_call.1} parent=5 // pred_region
        %s280 = ssub.s32 %s21, 1
        %s281 = sand.u32 %s34, 1
        %s282 = scalar_lea.sflag [#allocation4], %s281
        %s283 = sand.u32 %s34, 1
        %s284 = smul.addr %s283, 8
        %s285 = scalar_lea.vmem [#allocation3], %s284
        // Predicated region
        $region49: #{tpu_custom_call.1} parent=47 // pred_check
          %p286 = pneg %p47
        $region50: #{tpu_custom_call.1} parent=47 // pred_check_branch
          %288 = sbr.rel (%p286) target = $region52
        $region51: #{tpu_custom_call.1} parent=47 // pred_region
          %290 = dma.done %s282, 128
        $region52: #{tpu_custom_call.1} parent=47 // pred_fallthru
          _
        // Predicated region
        $region53: #{tpu_custom_call.1} parent=47 // pred_check
          %p291 = pneg %p68
        $region54: #{tpu_custom_call.1} parent=47 // pred_check_branch
          %293 = sbr.rel (%p291) target = $region56
        $region55: #{tpu_custom_call.1} parent=47 // pred_region
          %295 = dma.done [#allocation7], 64
        $region56: #{tpu_custom_call.1} parent=47 // pred_fallthru
          _
        // Predicated region
        $region57: #{tpu_custom_call.1} parent=47 // pred_check
          %p296 = pneg %p131
        $region58: #{tpu_custom_call.1} parent=47 // pred_check_branch
          %298 = sbr.rel (%p296) target = $region60
        $region59: #{tpu_custom_call.1} parent=47 // pred_region
          %300 = dma.done [#allocation7], 64
        $region60: #{tpu_custom_call.1} parent=47 // pred_fallthru
          _
        %s301 = sand.u32 %s34, 1
        %s302 = scalar_lea.sflag [#allocation4], %s301
        %s303 = sand.u32 %s34, 1
        %s304 = smul.addr %s303, 8
        %s305 = scalar_lea.vmem [#allocation3], %s304
        %p306 = pneg %p47
        %p307 = pneg %p44
        %p308 = pneg %p68
        %p309 = pneg %p65
        %p310 = pneg %p89
        %p311 = pneg %p86
        %p312 = pneg %p110
        %p313 = pneg %p107
        %p314 = pneg %p131
        %p315 = pneg %p128
        %p316 = pneg %p152
        %p317 = pneg %p149
        %p318 = pneg %p173
        %p319 = pneg %p170
        %p320 = pneg %p199
        %p321 = pneg %p196
        %s322 = sand.u32 %s186, 1
        %s323 = scalar_lea.sflag [#allocation5], %s322
        %s324 = sand.u32 %s186, 1
        %s325 = smul.addr %s324, 16
        %s326 = scalar_lea.vmem [#allocation9], %s325
        %s328 = sld [smem:[#allocation2]]
        %v329 = vlaneseq
        %v330 = vand.u32 %v329, 127
        %v331 = vadd.s32 %v330, 128
        %vm332 = vcmp.lt.s32.totalorder %v330, 0
        %v333 = vsub.s32 0, %v330
        %v334 = vsel %vm332, %v333, %v330
        %v335 = vshrl.u32 %v334, 4
        %v336 = vand.u32 %v334, 15
        %v337 = vsub.s32 0, %v336
        %v338 = vsel %vm332, %v337, %v336
        %vm339 = vcmp.lt.s32.totalorder %v331, 0
        %v340 = vsub.s32 0, %v331
        %v341 = vsel %vm339, %v340, %v331
        %v342 = vshrl.u32 %v341, 4
        %v343 = vand.u32 %v341, 15
        %v344 = vsub.s32 0, %v343
        %v345 = vsel %vm339, %v344, %v343
        %vm346 = vcmp.ne.s32.totalorder %v338, 0
        %vm347 = vcmp.ne.s32.totalorder %v345, 0
        %vm348 = vcmp.lt.s32.totalorder %v338, 0
        %vm349 = vcmp.lt.s32.totalorder %v345, 0
        %vm350 = vmand %vm348, %vm346
        %vm351 = vmand %vm349, %vm347
        %v352 = vadd.s32 %v338, 16
        %v353 = vadd.s32 %v345, 16
        %v354 = vsel %vm350, %v352, %v338
        %v355 = vsel %vm351, %v353, %v345
        %vm356 = vcmp.eq.s32.totalorder %v354, 0
        %vm357 = vcmp.eq.s32.totalorder %v355, 0
        %vm358 = vcmp.eq.s32.totalorder %v354, 15
        %vm359 = vcmp.eq.s32.totalorder %v355, 15
        %v360 = vld [vmem:[#allocation6] sm:$0xf]
        %v361 = vld [vmem:[%s3] sm:$0xff]
        %v362 = vld [vmem:[%s2] sm:$0xf]
        %v363 = vld [vmem:[#allocation8] sm:$0xf]
        %v364 = vld [vmem:[%s5] sm:$0xf]
        %v365 = vld [vmem:[%s285] sm:$0xff]
        %367 = vst [vmem:[#allocation1] ss:$2 sm:$0xff] %v365
        %v368 = vld.sshfl [vmem:[#allocation1] sm:$0xff pattern:$0x75316420]
        %v369 = vld.sshfl [vmem:[#allocation1 + $0x8] sm:$0xff pattern:$0x75316420]
        %372 = vrot.lane.b32.xlu0 %v368, 113
        %v373 = vpop.permute.xlu0 %372
        %374 = vrot.lane.b32.xlu0 %v369, 113
        %v375 = vpop.permute.xlu0 %374
        %vm376 = vcmp.lt.s32.totalorder %v330, 113
        %v377 = vsel %vm376, %v373, %v375
        %v378 = vsel %vm376, %v375, %v373
        %379 = vst [vmem:[#allocation1] ss:$2 sm:$0xff] %v365
        %v380 = vld.sshfl [vmem:[#allocation1] sm:$0xff pattern:$0x75316420]
        %v381 = vld.sshfl [vmem:[#allocation1 + $0x8] sm:$0xff pattern:$0x75316420]
        %384 = vrot.lane.b32.xlu0 %v380, 1
        %v385 = vpop.permute.xlu0 %384
        %386 = vrot.lane.b32.xlu0 %v381, 1
        %v387 = vpop.permute.xlu0 %386
        %vm388 = vcmp.lt.s32.totalorder %v330, 1
        %v389 = vsel %vm388, %v385, %v387
        %v390 = vsel %vm388, %v387, %v385
        %v391 = vsel %vm356, 1, 0
        %v392 = vsel %vm357, 1, 0
        %vm393 = vcmp.eq.s32.totalorder %v391, 1
        %vm394 = vcmp.eq.s32.totalorder %v392, 1
        %v395 = vsel %vm393, %v377, %v390
        %v396 = vsel %vm394, %v378, %v389
        %397 = vst [vmem:[#allocation1] ss:$2 sm:$0xff] %v365
        %v398 = vld.sshfl [vmem:[#allocation1] sm:$0xff pattern:$0x75316420]
        %v399 = vld.sshfl [vmem:[#allocation1 + $0x8] sm:$0xff pattern:$0x75316420]
        %402 = vrot.lane.b32.xlu0 %v398, 15
        %v403 = vpop.permute.xlu0 %402
        %404 = vrot.lane.b32.xlu0 %v399, 15
        %v405 = vpop.permute.xlu0 %404
        %vm406 = vcmp.lt.s32.totalorder %v330, 15
        %v407 = vsel %vm406, %v403, %v405
        %v408 = vsel %vm406, %v405, %v403
        %409 = vst [vmem:[#allocation1] ss:$2 sm:$0xff] %v365
        %v410 = vld.sshfl [vmem:[#allocation1] sm:$0xff pattern:$0x75316420]
        %v411 = vld.sshfl [vmem:[#allocation1 + $0x8] sm:$0xff pattern:$0x75316420]
        %414 = vrot.lane.b32.xlu0 %v410, 127
        %v415 = vpop.permute.xlu0 %414
        %416 = vrot.lane.b32.xlu0 %v411, 127
        %v417 = vpop.permute.xlu0 %416
        %vm418 = vcmp.lt.s32.totalorder %v330, 127
        %v419 = vsel %vm418, %v415, %v417
        %v420 = vsel %vm418, %v417, %v415
        %v421 = vsel %vm358, 1, 0
        %v422 = vsel %vm359, 1, 0
        %vm423 = vcmp.eq.s32.totalorder %v421, 1
        %vm424 = vcmp.eq.s32.totalorder %v422, 1
        %v425 = vsel %vm423, %v408, %v419
        %v426 = vsel %vm424, %v407, %v420
        %427 = vrot.lane.b32.xlu0 %v395, 16
        %v428 = vpop.permute.xlu0 %427
        %429 = vrot.lane.b32.xlu0 %v396, 16
        %v430 = vpop.permute.xlu0 %429
        %vm431 = vcmp.lt.s32.totalorder %v330, 16
        %v432 = vsel %vm431, %v428, %v430
        %v433 = vsel %vm431, %v430, %v428
        %435 = vset.pattern.permute.xlu0 0
        %436 = vperm.xlu0 %435, %v360
        %v437 = vpop.permute.xlu0 %436
        %v439 = vmul.f32 %v433, %v437
        %v440 = vmul.f32 %v432, %v437
        %v441 = vadd.f32 %v439, 0.0
        %v442 = vadd.f32 %v440, 0.0
        %443 = vst [vmem:[#allocation1] ss:$2 sm:$0xff] %v365
        %v444 = vld.sshfl [vmem:[#allocation1] sm:$0xff pattern:$0x75316420]
        %v445 = vld.sshfl [vmem:[#allocation1 + $0x8] sm:$0xff pattern:$0x75316420]
        %448 = vrot.lane.b32.xlu0 %v444, 16
        %v449 = vpop.permute.xlu0 %448
        %450 = vrot.lane.b32.xlu0 %v445, 16
        %v451 = vpop.permute.xlu0 %450
        %v452 = vsel %vm431, %v449, %v451
        %v453 = vsel %vm431, %v451, %v449
        %454 = vset.pattern.permute.xlu0 1
        %455 = vperm.xlu0 %454, %v360
        %v456 = vpop.permute.xlu0 %455
        %v458 = vmul.f32 %v453, %v456
        %v459 = vmul.f32 %v452, %v456
        %v460 = vadd.f32 %v441, %v458
        %v461 = vadd.f32 %v442, %v459
        %462 = vrot.lane.b32.xlu0 %v425, 16
        %v463 = vpop.permute.xlu0 %462
        %464 = vrot.lane.b32.xlu0 %v426, 16
        %v465 = vpop.permute.xlu0 %464
        %v466 = vsel %vm431, %v463, %v465
        %v467 = vsel %vm431, %v465, %v463
        %468 = vset.pattern.permute.xlu0 2
        %469 = vperm.xlu0 %468, %v360
        %v470 = vpop.permute.xlu0 %469
        %v472 = vmul.f32 %v467, %v470
        %v473 = vmul.f32 %v466, %v470
        %v474 = vadd.f32 %v460, %v472
        %v475 = vadd.f32 %v461, %v473
        %476 = vset.pattern.permute.xlu0 3
        %477 = vperm.xlu0 %476, %v360
        %v478 = vpop.permute.xlu0 %477
        %v480 = vmul.f32 %v395, %v478
        %v481 = vmul.f32 %v396, %v478
        %v482 = vadd.f32 %v474, %v480
        %v483 = vadd.f32 %v475, %v481
        %484 = vset.pattern.permute.xlu0 4
        %485 = vperm.xlu0 %484, %v360
        %v486 = vpop.permute.xlu0 %485
        %v488 = vunpack.c.l.s4 839922192
        %v489 = vunpack.c.0.s8 %v488
        %v490 = vperm.slane %v486, %v489
        %v492 = vmul.f32 %v365, %v490
        %494 = vst [vmem:[#allocation1] ss:$2 sm:$0xff] %v492
        %v495 = vld.sshfl [vmem:[#allocation1] sm:$0xff pattern:$0x75316420]
        %v496 = vld.sshfl [vmem:[#allocation1 + $0x8] sm:$0xff pattern:$0x75316420]
        %v499 = vadd.f32 %v482, %v495
        %v500 = vadd.f32 %v483, %v496
        %501 = vset.pattern.permute.xlu0 5
        %502 = vperm.xlu0 %501, %v360
        %v503 = vpop.permute.xlu0 %502
        %v505 = vmul.f32 %v425, %v503
        %v506 = vmul.f32 %v426, %v503
        %v507 = vadd.f32 %v499, %v505
        %v508 = vadd.f32 %v500, %v506
        %509 = vrot.lane.b32.xlu0 %v395, 112
        %v510 = vpop.permute.xlu0 %509
        %511 = vrot.lane.b32.xlu0 %v396, 112
        %v512 = vpop.permute.xlu0 %511
        %vm513 = vcmp.lt.s32.totalorder %v330, 112
        %v514 = vsel %vm513, %v510, %v512
        %v515 = vsel %vm513, %v512, %v510
        %516 = vset.pattern.permute.xlu0 6
        %517 = vperm.xlu0 %516, %v360
        %v518 = vpop.permute.xlu0 %517
        %v520 = vmul.f32 %v514, %v518
        %v521 = vmul.f32 %v515, %v518
        %v522 = vadd.f32 %v507, %v520
        %v523 = vadd.f32 %v508, %v521
        %524 = vst [vmem:[#allocation1] ss:$2 sm:$0xff] %v365
        %v525 = vld.sshfl [vmem:[#allocation1] sm:$0xff pattern:$0x75316420]
        %v526 = vld.sshfl [vmem:[#allocation1 + $0x8] sm:$0xff pattern:$0x75316420]
        %529 = vrot.lane.b32.xlu0 %v525, 112
        %v530 = vpop.permute.xlu0 %529
        %531 = vrot.lane.b32.xlu0 %v526, 112
        %v532 = vpop.permute.xlu0 %531
        %v533 = vsel %vm513, %v530, %v532
        %v534 = vsel %vm513, %v532, %v530
        %535 = vset.pattern.permute.xlu0 7
        %536 = vperm.xlu0 %535, %v360
        %v537 = vpop.permute.xlu0 %536
        %v539 = vmul.f32 %v533, %v537
        %v540 = vmul.f32 %v534, %v537
        %v541 = vadd.f32 %v522, %v539
        %v542 = vadd.f32 %v523, %v540
        %543 = vrot.lane.b32.xlu0 %v425, 112
        %v544 = vpop.permute.xlu0 %543
        %545 = vrot.lane.b32.xlu0 %v426, 112
        %v546 = vpop.permute.xlu0 %545
        %v547 = vsel %vm513, %v544, %v546
        %v548 = vsel %vm513, %v546, %v544
        %549 = vset.pattern.permute.xlu0 8
        %550 = vperm.xlu0 %549, %v360
        %v551 = vpop.permute.xlu0 %550
        %v553 = vmul.f32 %v547, %v551
        %v554 = vmul.f32 %v548, %v551
        %v555 = vadd.f32 %v541, %v553
        %v556 = vadd.f32 %v542, %v554
        %557 = vst [vmem:[#allocation1] ss:$2 sm:$0xff] %v365
        %v558 = vld.sshfl [vmem:[#allocation1] sm:$0xff pattern:$0x75316420]
        %v559 = vld.sshfl [vmem:[#allocation1 + $0x8] sm:$0xff pattern:$0x75316420]
        %v562 = vadd.f32 %v555, %v558
        %v563 = vadd.f32 %v556, %v559
        %v564 = vpack.c.bf16 %v562, %v562
        %v565 = vpack.c.bf16 %v563, %v563
        %vm566 = vcmask 31744
        %v568 = vsel %vm566, %v362, 0
        %vm570 = vcmask 1041408
        %v572 = vsel %vm570, %v564, 0
        %v575 = vsel %vm570, %v565, 0
        %577 = vmatpush.bf16.msra.mxu0 0
        %578 = vmatpush.bf16.msra.mxu0 0
        %579 = vmatpush.bf16.msra.mxu0 0
        %580 = vmatpush.bf16.msra.mxu0 0
        %581 = vmatpush.bf16.msra.mxu0 0
        %582 = vmatpush.bf16.msra.mxu0 0
        %583 = vmatpush.bf16.msra.mxu0 0
        %584 = vmatpush.bf16.msra.mxu0 %v572
        %585 = vmatmul.bf16.gmra.mxu0 %v568
        %v586 = vpop.f32.mrf.mxu0
        %v587 = vadd.f32 0.0, %v586
        %v588 = vpop.f32.mrf.mxu0
        %589 = vdwg.mxu0
        %590 = vmatpush.bf16.msra.mxu0 0
        %591 = vmatpush.bf16.msra.mxu0 0
        %592 = vmatpush.bf16.msra.mxu0 0
        %593 = vmatpush.bf16.msra.mxu0 0
        %594 = vmatpush.bf16.msra.mxu0 0
        %595 = vmatpush.bf16.msra.mxu0 0
        %596 = vmatpush.bf16.msra.mxu0 0
        %597 = vmatpush.bf16.msra.mxu0 %v575
        %598 = vmatmul.bf16.gmra.mxu0 %v568
        %v599 = vpop.f32.mrf.mxu0
        %v600 = vadd.f32 0.0, %v599
        %v601 = vpop.f32.mrf.mxu0
        %602 = vdwg.mxu0
        %vm603 = vcmp.gt.f32.partialorder %v587, 0.0
        %vm604 = vcmp.gt.f32.partialorder %v600, 0.0
        %v605 = vstv %s328
        %v606 = vmul.f32 %v605, %v587
        %v607 = vmul.f32 %v605, %v600
        %v608 = vsel %vm603, %v587, %v606
        %v609 = vsel %vm604, %v600, %v607
        %610 = vrot.lane.b32.xlu0 %v608, 113
        %v611 = vpop.permute.xlu0 %610
        %612 = vrot.lane.b32.xlu0 %v609, 113
        %v613 = vpop.permute.xlu0 %612
        %v614 = vsel %vm376, %v611, %v613
        %v615 = vsel %vm376, %v613, %v611
        %616 = vrot.lane.b32.xlu0 %v608, 1
        %v617 = vpop.permute.xlu0 %616
        %618 = vrot.lane.b32.xlu0 %v609, 1
        %v619 = vpop.permute.xlu0 %618
        %v620 = vsel %vm388, %v617, %v619
        %v621 = vsel %vm388, %v619, %v617
        %v622 = vsel %vm393, %v614, %v621
        %v623 = vsel %vm394, %v615, %v620
        %624 = vrot.lane.b32.xlu0 %v608, 15
        %v625 = vpop.permute.xlu0 %624
        %626 = vrot.lane.b32.xlu0 %v609, 15
        %v627 = vpop.permute.xlu0 %626
        %v628 = vsel %vm406, %v625, %v627
        %v629 = vsel %vm406, %v627, %v625
        %630 = vrot.lane.b32.xlu0 %v608, 127
        %v631 = vpop.permute.xlu0 %630
        %632 = vrot.lane.b32.xlu0 %v609, 127
        %v633 = vpop.permute.xlu0 %632
        %v634 = vsel %vm418, %v631, %v633
        %v635 = vsel %vm418, %v633, %v631
        %v636 = vsel %vm423, %v629, %v634
        %v637 = vsel %vm424, %v628, %v635
        %638 = vrot.lane.b32.xlu0 %v622, 16
        %v639 = vpop.permute.xlu0 %638
        %640 = vrot.lane.b32.xlu0 %v623, 16
        %v641 = vpop.permute.xlu0 %640
        %v642 = vsel %vm431, %v639, %v641
        %v643 = vsel %vm431, %v641, %v639
        %645 = vset.pattern.permute.xlu0 0
        %646 = vperm.xlu0 %645, %v361
        %v647 = vpop.permute.xlu0 %646
        %v649 = vmul.f32 %v643, %v647
        %v650 = vmul.f32 %v642, %v647
        %v651 = vadd.f32 %v649, 0.0
        %v652 = vadd.f32 %v650, 0.0
        %653 = vrot.lane.b32.xlu0 %v608, 16
        %v654 = vpop.permute.xlu0 %653
        %655 = vrot.lane.b32.xlu0 %v609, 16
        %v656 = vpop.permute.xlu0 %655
        %v657 = vsel %vm431, %v654, %v656
        %v658 = vsel %vm431, %v656, %v654
        %659 = vset.pattern.permute.xlu0 1
        %660 = vperm.xlu0 %659, %v361
        %v661 = vpop.permute.xlu0 %660
        %v663 = vmul.f32 %v658, %v661
        %v664 = vmul.f32 %v657, %v661
        %v665 = vadd.f32 %v651, %v663
        %v666 = vadd.f32 %v652, %v664
        %667 = vrot.lane.b32.xlu0 %v636, 16
        %v668 = vpop.permute.xlu0 %667
        %669 = vrot.lane.b32.xlu0 %v637, 16
        %v670 = vpop.permute.xlu0 %669
        %v671 = vsel %vm431, %v668, %v670
        %v672 = vsel %vm431, %v670, %v668
        %673 = vset.pattern.permute.xlu0 2
        %674 = vperm.xlu0 %673, %v361
        %v675 = vpop.permute.xlu0 %674
        %v677 = vmul.f32 %v672, %v675
        %v678 = vmul.f32 %v671, %v675
        %v679 = vadd.f32 %v665, %v677
        %v680 = vadd.f32 %v666, %v678
        %681 = vset.pattern.permute.xlu0 3
        %682 = vperm.xlu0 %681, %v361
        %v683 = vpop.permute.xlu0 %682
        %v685 = vmul.f32 %v622, %v683
        %v686 = vmul.f32 %v623, %v683
        %v687 = vadd.f32 %v679, %v685
        %v688 = vadd.f32 %v680, %v686
        %689 = vset.pattern.permute.xlu0 4
        %690 = vperm.xlu0 %689, %v361
        %v691 = vpop.permute.xlu0 %690
        %v693 = vmul.f32 %v608, %v691
        %v694 = vmul.f32 %v609, %v691
        %v695 = vadd.f32 %v687, %v693
        %v696 = vadd.f32 %v688, %v694
        %697 = vset.pattern.permute.xlu0 5
        %698 = vperm.xlu0 %697, %v361
        %v699 = vpop.permute.xlu0 %698
        %v701 = vmul.f32 %v636, %v699
        %v702 = vmul.f32 %v637, %v699
        %v703 = vadd.f32 %v695, %v701
        %v704 = vadd.f32 %v696, %v702
        %705 = vrot.lane.b32.xlu0 %v622, 112
        %v706 = vpop.permute.xlu0 %705
        %707 = vrot.lane.b32.xlu0 %v623, 112
        %v708 = vpop.permute.xlu0 %707
        %v709 = vsel %vm513, %v706, %v708
        %v710 = vsel %vm513, %v708, %v706
        %711 = vset.pattern.permute.xlu0 6
        %712 = vperm.xlu0 %711, %v361
        %v713 = vpop.permute.xlu0 %712
        %v715 = vmul.f32 %v709, %v713
        %v716 = vmul.f32 %v710, %v713
        %v717 = vadd.f32 %v703, %v715
        %v718 = vadd.f32 %v704, %v716
        %719 = vrot.lane.b32.xlu0 %v608, 112
        %v720 = vpop.permute.xlu0 %719
        %721 = vrot.lane.b32.xlu0 %v609, 112
        %v722 = vpop.permute.xlu0 %721
        %v723 = vsel %vm513, %v720, %v722
        %v724 = vsel %vm513, %v722, %v720
        %725 = vset.pattern.permute.xlu0 7
        %726 = vperm.xlu0 %725, %v361
        %v727 = vpop.permute.xlu0 %726
        %v729 = vmul.f32 %v723, %v727
        %v730 = vmul.f32 %v724, %v727
        %v731 = vadd.f32 %v717, %v729
        %v732 = vadd.f32 %v718, %v730
        %733 = vrot.lane.b32.xlu0 %v636, 112
        %v734 = vpop.permute.xlu0 %733
        %735 = vrot.lane.b32.xlu0 %v637, 112
        %v736 = vpop.permute.xlu0 %735
        %v737 = vsel %vm513, %v734, %v736
        %v738 = vsel %vm513, %v736, %v734
        %739 = vset.pattern.permute.xlu0 8
        %740 = vperm.xlu0 %739, %v361
        %v741 = vpop.permute.xlu0 %740
        %v743 = vmul.f32 %v737, %v741
        %v744 = vmul.f32 %v738, %v741
        %v745 = vadd.f32 %v731, %v743
        %v746 = vadd.f32 %v732, %v744
        %v747 = vadd.f32 %v745, %v608
        %v748 = vadd.f32 %v746, %v609
        %v749 = vpack.c.bf16 %v747, %v747
        %v750 = vpack.c.bf16 %v748, %v748
        %751 = vst [vmem:[#allocation1] ss:$2 sm:$0xff] %v365
        %v752 = vld.sshfl [vmem:[#allocation1] sm:$0xff pattern:$0x75316420]
        %v753 = vld.sshfl [vmem:[#allocation1 + $0x8] sm:$0xff pattern:$0x75316420]
        %v756 = vpack.c.bf16 %v752, %v752
        %v757 = vpack.c.bf16 %v753, %v753
        %v759 = vsel %vm566, %v364, 0
        %v762 = vsel %vm570, %v756, 0
        %v765 = vsel %vm570, %v757, 0
        %767 = vmatpush.bf16.msra.mxu0 0
        %768 = vmatpush.bf16.msra.mxu0 0
        %769 = vmatpush.bf16.msra.mxu0 0
        %770 = vmatpush.bf16.msra.mxu0 0
        %771 = vmatpush.bf16.msra.mxu0 0
        %772 = vmatpush.bf16.msra.mxu0 0
        %773 = vmatpush.bf16.msra.mxu0 0
        %774 = vmatpush.bf16.msra.mxu0 %v762
        %775 = vmatmul.bf16.gmra.mxu0 %v759
        %v776 = vpop.f32.mrf.mxu0
        %v777 = vadd.f32 0.0, %v776
        %v778 = vpop.f32.mrf.mxu0
        %779 = vdwg.mxu0
        %780 = vmatpush.bf16.msra.mxu0 0
        %781 = vmatpush.bf16.msra.mxu0 0
        %782 = vmatpush.bf16.msra.mxu0 0
        %783 = vmatpush.bf16.msra.mxu0 0
        %784 = vmatpush.bf16.msra.mxu0 0
        %785 = vmatpush.bf16.msra.mxu0 0
        %786 = vmatpush.bf16.msra.mxu0 0
        %787 = vmatpush.bf16.msra.mxu0 %v765
        %788 = vmatmul.bf16.gmra.mxu0 %v759
        %v789 = vpop.f32.mrf.mxu0
        %v790 = vadd.f32 0.0, %v789
        %v791 = vpop.f32.mrf.mxu0
        %792 = vdwg.mxu0
        %vm793 = vcmask 64512
        %v795 = vsel %vm793, %v363, 0
        %vm797 = vcmask 1043456
        %v799 = vsel %vm797, %v749, 0
        %v802 = vsel %vm797, %v750, 0
        %804 = vmatpush.bf16.msra.mxu0 0
        %805 = vmatpush.bf16.msra.mxu0 0
        %806 = vmatpush.bf16.msra.mxu0 0
        %807 = vmatpush.bf16.msra.mxu0 0
        %808 = vmatpush.bf16.msra.mxu0 0
        %809 = vmatpush.bf16.msra.mxu0 0
        %810 = vmatpush.bf16.msra.mxu0 0
        %811 = vmatpush.bf16.msra.mxu0 %v799
        %812 = vmatmul.bf16.gmra.mxu0 %v795
        %v813 = vpop.f32.mrf.mxu0
        %v814 = vadd.f32 %v777, %v813
        %v815 = vpop.f32.mrf.mxu0
        %816 = vdwg.mxu0
        %817 = vmatpush.bf16.msra.mxu0 0
        %818 = vmatpush.bf16.msra.mxu0 0
        %819 = vmatpush.bf16.msra.mxu0 0
        %820 = vmatpush.bf16.msra.mxu0 0
        %821 = vmatpush.bf16.msra.mxu0 0
        %822 = vmatpush.bf16.msra.mxu0 0
        %823 = vmatpush.bf16.msra.mxu0 0
        %824 = vmatpush.bf16.msra.mxu0 %v802
        %825 = vmatmul.bf16.gmra.mxu0 %v795
        %v826 = vpop.f32.mrf.mxu0
        %v827 = vadd.f32 %v790, %v826
        %v828 = vpop.f32.mrf.mxu0
        %829 = vdwg.mxu0
        %830 = vst [vmem:[%s326] sm:$0xff] %v814
        %831 = vst [vmem:[%s326 + $0x8] sm:$0xff] %v827
        %s832 = sand.u32 %s186, 1
        %s833 = scalar_lea.sflag [#allocation5], %s832
        %s834 = sand.u32 %s186, 1
        %s835 = smul.addr %s834, 16
        %s836 = scalar_lea.vmem [#allocation9], %s835
        // Predicated region
        $region61: #{tpu_custom_call.1} parent=47 // pred_check
          %p837 = pneg %p196
        $region62: #{tpu_custom_call.1} parent=47 // pred_check_branch
          %839 = sbr.rel (%p837) target = $region64
        $region63: #{tpu_custom_call.1} parent=47 // pred_region
          %841 = vsyncadd %s833, 0
          %s842 = smul.addr %s26, 2
          %s843 = smul.addr %s842, 8
          %s844 = scalar_lea.hbm %s7, %s843
          %s846 = sshll.u32 %s836, 4
          %s847 = int_to_ptr.vmem [resolvable:$true] %s846
          %s848 = sshll.u32 %s844, 4
          %s849 = int_to_ptr.hbm [resolvable:$true] %s848
          %851 = dma.vmem_to_hbm [thread:$0]  %s847, 256, %s849, %s833
        $region64: #{tpu_custom_call.1} parent=47 // pred_fallthru
          _
      $region48: #{tpu_custom_call.1} parent=5 // pred_fallthru
        _
      %p852 = scmp.le.s32.totalorder 2, %s21
      // Predicated region
      $region65: #{tpu_custom_call.1} parent=5 // pred_check
        %p853 = pneg %p852
      $region66: #{tpu_custom_call.1} parent=5 // pred_check_branch
        %855 = sbr.rel (%p853) target = $region68
      $region67: #{tpu_custom_call.1} parent=5 // pred_region
        %s856 = ssub.s32 %s21, 2
        // Predicated region
        $region69: #{tpu_custom_call.1} parent=67 // pred_check
          %p857 = pneg %p202
        $region70: #{tpu_custom_call.1} parent=67 // pred_check_branch
          %859 = sbr.rel (%p857) target = $region72
        $region71: #{tpu_custom_call.1} parent=67 // pred_region
          %s860 = sand.u32 %s187, 1
          %s861 = scalar_lea.sflag [#allocation5], %s860
          %s862 = sand.u32 %s187, 1
          %s863 = smul.addr %s862, 16
          %s864 = scalar_lea.vmem [#allocation9], %s863
          %866 = dma.done %s861, 256
        $region72: #{tpu_custom_call.1} parent=67 // pred_fallthru
          _
      $region68: #{tpu_custom_call.1} parent=5 // pred_fallthru
        _
    $region6: #{tpu_custom_call.1} parent=1 // loop_footer
      %s25 = sadd.s32 1, %s21
    $region7: #{tpu_custom_call.1} parent=1 // loop_footer_branch
      %20 = sbr.rel target = $region3
    $region8: #{tpu_custom_call.1} parent=1 // loop_exit
      _
    %867 = vsyncpa [#allocation4], 1
    %s868 = scalar_lea.sflag [#allocation4], 1
    %869 = vsyncpa %s868, 1
    %870 = vsyncpa [#allocation7], 1
    %871 = vsyncpa [#allocation5], 1
    %s872 = scalar_lea.sflag [#allocation5], 1
    %873 = vsyncpa %s872, 1

</llo_original>
